<compile_context>
chip_gen: v5e
topology: v5e:2x2
jax: 0.10.0
libtpu: 0.0.40
codegen_flags: <defaults>
</compile_context>

<pallas_src>
import functools

import jax
import jax.numpy as jnp
from jax.experimental import pallas as pl
from jax.experimental.pallas import tpu as pltpu


def _round_up(x, m):
    return (x + m - 1) // m * m


def gru_cell_kernel(x_ref, h0_ref, w3_ref, u2_ref, uh_ref, b3_ref, h1_ref, *, hidden_p):
    H = hidden_p
    x = x_ref[...]
    h0 = h0_ref[...]

    # Fused input-side preactivations for all three gates + fused bias row:
    # one wide MXU matmul, one broadcast-add over a lane-dense (TB, 3H) f32 slab.
    gx = jnp.dot(x, w3_ref[...], preferred_element_type=jnp.float32) + b3_ref[...]
    # Fused hidden-side preactivations for z and r (one (TB, 2H) matmul).
    gh = jnp.dot(h0, u2_ref[...], preferred_element_type=jnp.float32)

    # One fused sigmoid slab for z and r (fewer VPU/EUP dispatches).
    zr = jax.nn.sigmoid(gx[:, :2 * H] + gh)
    z = zr[:, :H]
    r = zr[:, H:]

    h0_f32 = h0.astype(jnp.float32)
    # Candidate gate: reset applied BEFORE the U_h matmul (original module semantics).
    rh = (r * h0_f32).astype(uh_ref.dtype)
    n = jnp.tanh(gx[:, 2 * H:] +
                 jnp.dot(rh, uh_ref[...], preferred_element_type=jnp.float32))

    # z*n + (1-z)*h0, rewritten with one fewer multiply.
    h1 = h0_f32 + z * (n - h0_f32)
    h1_ref[...] = h1.astype(h1_ref.dtype)


def prepare_gru_params(params, *, compute_dtype=jnp.bfloat16):
    """One-time fusion/padding/cast of the GRUCell weights.

    Call this ONCE at parameter-load time and reuse the result for every step —
    per-call weight re-fusion doubles HBM weight traffic.

    params: dict with w_z,u_z,b_z,w_r,u_r,b_r,w_h,u_h,b_h where
      w_* : (input_size, hidden), u_* : (hidden, hidden), b_* : (hidden,)
      (pre-transposed relative to nn.Linear weight storage).
    compute_dtype: dtype fed to the MXU (default bf16; accumulation stays f32).
    """
    cdt = jnp.dtype(compute_dtype)
    input_size, hidden = params["w_z"].shape
    I_p = _round_up(input_size, 128)
    H_p = _round_up(hidden, 128)

    def pad2(a, rows, cols):
        return jnp.pad(a, ((0, rows - a.shape[0]), (0, cols - a.shape[1])))

    def pad1(b):
        return jnp.pad(b, (0, H_p - b.shape[0]))

    # Fused weights: W3 = [W_z | W_r | W_h], U2 = [U_z | U_r], U_h separate.
    w3 = jnp.concatenate([pad2(params["w_z"], I_p, H_p),
                          pad2(params["w_r"], I_p, H_p),
                          pad2(params["w_h"], I_p, H_p)], axis=1).astype(cdt)
    u2 = jnp.concatenate([pad2(params["u_z"], H_p, H_p),
                          pad2(params["u_r"], H_p, H_p)], axis=1).astype(cdt)
    uh = pad2(params["u_h"], H_p, H_p).astype(cdt)
    # Fused bias row (1, 3H) kept in f32 (added to the f32 preactivation slab).
    b3 = jnp.concatenate([pad1(params["b_z"]),
                          pad1(params["b_r"]),
                          pad1(params["b_h"])]).reshape(1, 3 * H_p).astype(jnp.float32)

    return {
        "w3": w3, "u2": u2, "uh": uh, "b3": b3,
        "input_size": int(input_size), "hidden": int(hidden),
        "I_p": int(I_p), "H_p": int(H_p), "compute_dtype": cdt,
    }


def gru_cell(x, h0, fused):
    """GRUCell forward. `fused` is the output of prepare_gru_params()."""
    batch, input_size = x.shape
    hidden = h0.shape[1]
    assert input_size == fused["input_size"] and hidden == fused["hidden"]
    I_p, H_p = fused["I_p"], fused["H_p"]
    cdt = fused["compute_dtype"]
    out_dtype = x.dtype
    w3, u2, uh, b3 = fused["w3"], fused["u2"], fused["uh"], fused["b3"]

    w_itemsize = cdt.itemsize
    o_itemsize = jnp.dtype(out_dtype).itemsize
    # Weights are single-buffered (constant index_map + pl.Buffered(1)).
    weight_bytes = (w3.size + u2.size + uh.size) * w_itemsize + b3.size * 4

    def est_vmem(tb):
        return (weight_bytes
                + 2 * tb * (I_p + H_p) * w_itemsize   # x/h0 tiles, double-buffered
                + 2 * tb * H_p * o_itemsize           # output tile, double-buffered
                + tb * 8 * H_p * 4)                   # f32 gate slabs / temps

    # Generation-aware VMEM capacity; fall back to the most restrictive (v7x per-core).
    try:
        vmem_cap = int(pltpu.get_tpu_info().vmem_capacity_bytes)
    except Exception:  # pragma: no cover - conservative fallback
        vmem_cap = 64 * 1024 * 1024
    vmem_budget = vmem_cap - 12 * 1024 * 1024   # headroom for compiler scratch

    # Batch tile: whole padded batch if small; otherwise 256 rows (amortizes MXU
    # weight-push / per-step overhead on the 256-wide v6e/v7x MXUs), falling back
    # to 128 when the 256-row footprint would not fit the VMEM budget.
    B_p = _round_up(batch, 8)
    if B_p <= 256:
        TB = B_p
    else:
        TB = 256 if est_vmem(256) <= vmem_budget else 128
        B_p = _round_up(batch, TB)

    vmem_needed = est_vmem(TB)
    vmem_limit = None
    if vmem_needed > 16 * 1024 * 1024:   # v5e default scoped limit (lowest of all gens)
        # Best effort if 1.25*needed exceeds the physical budget (see N-tiling TODO).
        vmem_limit = min(int(vmem_needed * 1.25), vmem_budget)

    num_tiles = B_p // TB
    # Megacore sharding only pays off with several batch tiles; with 1-2 tiles the
    # (weight-bound) kernel would just DMA the full fused weights into both cores.
    dim_sem = ("parallel",) if num_tiles >= 4 else ("arbitrary",)

    def pad2(a, rows, cols):
        return jnp.pad(a, ((0, rows - a.shape[0]), (0, cols - a.shape[1])))

    x_p = pad2(x, B_p, I_p).astype(cdt)
    h0_p = pad2(h0, B_p, H_p).astype(cdt)

    flops = 2 * B_p * (I_p * 3 * H_p + H_p * 2 * H_p + H_p * H_p) + 10 * B_p * H_p
    bytes_accessed = (weight_bytes
                      + (x_p.size + h0_p.size) * w_itemsize
                      + B_p * H_p * o_itemsize)
    cost = pl.CostEstimate(flops=int(flops),
                           transcendentals=int(3 * B_p * H_p),
                           bytes_accessed=int(bytes_accessed))

    kernel = functools.partial(gru_cell_kernel, hidden_p=H_p)
    out_shape = jax.ShapeDtypeStruct((B_p, H_p), out_dtype)

    def build(single_buffer_weights):
        def resident(shape):
            if single_buffer_weights:
                # Constant index_map => single-buffer; halves resident-weight VMEM.
                return pl.BlockSpec(shape, lambda b: (0, 0),
                                    pipeline_mode=pl.Buffered(1))
            return pl.BlockSpec(shape, lambda b: (0, 0))

        return pl.pallas_call(
            kernel,
            out_shape=out_shape,
            grid=(num_tiles,),
            in_specs=[
                pl.BlockSpec((TB, I_p), lambda b: (b, 0)),   # x batch tile (pipelined)
                pl.BlockSpec((TB, H_p), lambda b: (b, 0)),   # h0 batch tile (pipelined)
                resident((I_p, 3 * H_p)),                    # fused W_z|W_r|W_h (resident)
                resident((H_p, 2 * H_p)),                    # fused U_z|U_r (resident)
                resident((H_p, H_p)),                        # U_h (resident)
                resident((1, 3 * H_p)),                      # fused bias row (resident)
            ],
            out_specs=pl.BlockSpec((TB, H_p), lambda b: (b, 0)),
            compiler_params=pltpu.CompilerParams(
                dimension_semantics=dim_sem,
                vmem_limit_bytes=vmem_limit,
            ),
            cost_estimate=cost,
        )

    try:
        h1_p = build(True)(x_p, h0_p, w3, u2, uh, b3)
    except Exception:
        # Fallback if this jax build rejects single-buffering via pl.Buffered(1).
        h1_p = build(False)(x_p, h0_p, w3, u2, uh, b3)

    return h1_p[:batch, :hidden]


def gru_cell_ref(x, h0, p):
    dot = lambda a, b: jnp.dot(a, b, precision=jax.lax.Precision.HIGHEST)
    z = jax.nn.sigmoid(dot(x, p["w_z"]) + dot(h0, p["u_z"]) + p["b_z"][None, :])
    r = jax.nn.sigmoid(dot(x, p["w_r"]) + dot(h0, p["u_r"]) + p["b_r"][None, :])
    h = jnp.tanh(dot(x, p["w_h"]) + dot(r * h0, p["u_h"]) + p["b_h"][None, :])
    return z * h + (1.0 - z) * h0


if __name__ == "__main__":
    batch = 4
    input_size = 16
    hidden_size = 32

    key = jax.random.PRNGKey(0)
    keys = jax.random.split(key, 11)

    x = jax.random.normal(keys[0], (batch, input_size), dtype=jnp.float32)
    h0 = jax.random.normal(keys[1], (batch, hidden_size), dtype=jnp.float32)

    scale = 0.1
    params = {
        "w_z": scale * jax.random.normal(keys[2], (input_size, hidden_size), jnp.float32),
        "u_z": scale * jax.random.normal(keys[3], (hidden_size, hidden_size), jnp.float32),
        "b_z": scale * jax.random.normal(keys[4], (hidden_size,), jnp.float32),
        "w_r": scale * jax.random.normal(keys[5], (input_size, hidden_size), jnp.float32),
        "u_r": scale * jax.random.normal(keys[6], (hidden_size, hidden_size), jnp.float32),
        "b_r": scale * jax.random.normal(keys[7], (hidden_size,), jnp.float32),
        "w_h": scale * jax.random.normal(keys[8], (input_size, hidden_size), jnp.float32),
        "u_h": scale * jax.random.normal(keys[9], (hidden_size, hidden_size), jnp.float32),
        "b_h": scale * jax.random.normal(keys[10], (hidden_size,), jnp.float32),
    }

    h1_ref = gru_cell_ref(x, h0, params)

    # f32 MXU path: tight tolerance against the pure-JAX reference.
    fused_f32 = prepare_gru_params(params, compute_dtype=jnp.float32)
    h1_f32 = gru_cell(x, h0, fused_f32)
    jax.block_until_ready(h1_f32)
    assert h1_f32.shape == (batch, hidden_size)
    err32 = float(jnp.max(jnp.abs(h1_f32 - h1_ref)))
    assert jnp.allclose(h1_f32, h1_ref, atol=1e-4, rtol=1e-4), f"f32 max abs err = {err32}"

    # Default bf16 weight/activation path (the weight-HBM-bound production config):
    # dtype-aware (looser) tolerance.
    fused_bf16 = prepare_gru_params(params)   # compute_dtype defaults to bf16
    h1_bf16 = gru_cell(x, h0, fused_bf16)
    jax.block_until_ready(h1_bf16)
    assert h1_bf16.shape == (batch, hidden_size)
    errbf = float(jnp.max(jnp.abs(h1_bf16 - h1_ref)))
    assert jnp.allclose(h1_bf16, h1_ref, atol=5e-2, rtol=5e-2), f"bf16 max abs err = {errbf}"

    print("KERNEL_OK")
</pallas_src>

<mosaic_0001>
module attributes {stable_mosaic.version = 11 : i64} {
  func.func @gru_cell_kernel(%arg0: i32, %arg1: memref<8x128xf32, #tpu.memory_space<vmem>>, %arg2: memref<8x128xf32, #tpu.memory_space<vmem>>, %arg3: memref<128x384xf32, #tpu.memory_space<vmem>>, %arg4: memref<128x256xf32, #tpu.memory_space<vmem>>, %arg5: memref<128x128xf32, #tpu.memory_space<vmem>>, %arg6: memref<1x384xf32, #tpu.memory_space<vmem>>, %arg7: memref<8x128xf32, #tpu.memory_space<vmem>>) attributes {dimension_semantics = [#tpu.dimension_semantics<arbitrary>], iteration_bounds = array<i64: 1>, scalar_prefetch = 0 : i64, scratch_operands = 0 : i64, tpu.core_type = #tpu.core_type<tc>, window_params = [{transform_indices = @transform_0, window_bounds = array<i64: 8, 128>}, {transform_indices = @transform_1, window_bounds = array<i64: 8, 128>}, {pipeline_mode = #tpu.pipeline_mode<synchronous>, transform_indices = @transform_2, window_bounds = array<i64: 128, 384>}, {pipeline_mode = #tpu.pipeline_mode<synchronous>, transform_indices = @transform_3, window_bounds = array<i64: 128, 256>}, {pipeline_mode = #tpu.pipeline_mode<synchronous>, transform_indices = @transform_4, window_bounds = array<i64: 128, 128>}, {pipeline_mode = #tpu.pipeline_mode<synchronous>, transform_indices = @transform_5, window_bounds = array<i64: 1, 384>}, {transform_indices = @transform_6, window_bounds = array<i64: 8, 128>}]} {
    %c0 = arith.constant 0 : index
    %c0_0 = arith.constant 0 : index
    %0 = vector.load %arg1[%c0, %c0_0] : memref<8x128xf32, #tpu.memory_space<vmem>>, vector<8x128xf32>
    %c0_1 = arith.constant 0 : index
    %c0_2 = arith.constant 0 : index
    %1 = vector.load %arg2[%c0_1, %c0_2] : memref<8x128xf32, #tpu.memory_space<vmem>>, vector<8x128xf32>
    %c0_3 = arith.constant 0 : index
    %c0_4 = arith.constant 0 : index
    %2 = vector.load %arg3[%c0_3, %c0_4] : memref<128x384xf32, #tpu.memory_space<vmem>>, vector<128x384xf32>
    %cst = arith.constant dense<0.000000e+00> : vector<8x384xf32>
    %3 = tpu.matmul %0, %2, %cst {dimension_numbers = #tpu.dot_dimension_numbers<[1], [0], [0], [1], [0, 0, 1, 1], [], []>} : vector<8x128xf32>, vector<128x384xf32>, vector<8x384xf32> -> vector<8x384xf32>
    %c0_5 = arith.constant 0 : index
    %c0_6 = arith.constant 0 : index
    %4 = vector.load %arg6[%c0_5, %c0_6] : memref<1x384xf32, #tpu.memory_space<vmem>>, vector<1x384xf32>
    %5 = vector.broadcast %4 : vector<1x384xf32> to vector<8x384xf32>
    %6 = arith.addf %3, %5 : vector<8x384xf32>
    %c0_7 = arith.constant 0 : index
    %c0_8 = arith.constant 0 : index
    %7 = vector.load %arg4[%c0_7, %c0_8] : memref<128x256xf32, #tpu.memory_space<vmem>>, vector<128x256xf32>
    %cst_9 = arith.constant dense<0.000000e+00> : vector<8x256xf32>
    %8 = tpu.matmul %1, %7, %cst_9 {dimension_numbers = #tpu.dot_dimension_numbers<[1], [0], [0], [1], [0, 0, 1, 1], [], []>} : vector<8x128xf32>, vector<128x256xf32>, vector<8x256xf32> -> vector<8x256xf32>
    %9 = vector.extract_strided_slice %6 {offsets = [0, 0], sizes = [8, 256], strides = [1, 1]} : vector<8x384xf32> to vector<8x256xf32>
    %10 = arith.addf %9, %8 : vector<8x256xf32>
    %11 = arith.negf %10 : vector<8x256xf32>
    %12 = math.exp %11 : vector<8x256xf32>
    %cst_10 = arith.constant 1.000000e+00 : f32
    %13 = vector.broadcast %cst_10 : f32 to vector<8x256xf32>
    %14 = arith.addf %13, %12 : vector<8x256xf32>
    %15 = arith.divf %13, %14 : vector<8x256xf32>
    %16 = vector.extract_strided_slice %15 {offsets = [0, 0], sizes = [8, 128], strides = [1, 1]} : vector<8x256xf32> to vector<8x128xf32>
    %17 = vector.extract_strided_slice %15 {offsets = [0, 128], sizes = [8, 128], strides = [1, 1]} : vector<8x256xf32> to vector<8x128xf32>
    %18 = arith.mulf %17, %1 : vector<8x128xf32>
    %19 = vector.extract_strided_slice %6 {offsets = [0, 256], sizes = [8, 128], strides = [1, 1]} : vector<8x384xf32> to vector<8x128xf32>
    %c0_11 = arith.constant 0 : index
    %c0_12 = arith.constant 0 : index
    %20 = vector.load %arg5[%c0_11, %c0_12] : memref<128x128xf32, #tpu.memory_space<vmem>>, vector<128x128xf32>
    %cst_13 = arith.constant dense<0.000000e+00> : vector<8x128xf32>
    %21 = tpu.matmul %18, %20, %cst_13 {dimension_numbers = #tpu.dot_dimension_numbers<[1], [0], [0], [1], [0, 0, 1, 1], [], []>} : vector<8x128xf32>, vector<128x128xf32>, vector<8x128xf32> -> vector<8x128xf32>
    %22 = arith.addf %19, %21 : vector<8x128xf32>
    %23 = math.tanh %22 : vector<8x128xf32>
    %24 = arith.subf %23, %1 : vector<8x128xf32>
    %25 = arith.mulf %16, %24 : vector<8x128xf32>
    %26 = arith.addf %1, %25 : vector<8x128xf32>
    %c0_14 = arith.constant 0 : index
    %c0_15 = arith.constant 0 : index
    %27 = vector.load %arg7[%c0_14, %c0_15] : memref<8x128xf32, #tpu.memory_space<vmem>>, vector<8x128xf32>
    tpu.vector_store %arg7[%c0_14, %c0_15], %26 {strides = array<i32>} : memref<8x128xf32, #tpu.memory_space<vmem>>, vector<8x128xf32>,
    return
  }
  func.func @transform_0(%arg0: i32) -> (i32, i32) {
    %c0_i32 = arith.constant 0 : i32
    %c0_i32_0 = arith.constant 0 : i32
    return %arg0, %c0_i32 : i32, i32
  }
  func.func @transform_1(%arg0: i32) -> (i32, i32) {
    %c0_i32 = arith.constant 0 : i32
    %c0_i32_0 = arith.constant 0 : i32
    return %arg0, %c0_i32 : i32, i32
  }
  func.func @transform_2(%arg0: i32) -> (i32, i32) {
    %c0_i32 = arith.constant 0 : i32
    %c0_i32_0 = arith.constant 0 : i32
    %c0_i32_1 = arith.constant 0 : i32
    return %c0_i32, %c0_i32_0 : i32, i32
  }
  func.func @transform_3(%arg0: i32) -> (i32, i32) {
    %c0_i32 = arith.constant 0 : i32
    %c0_i32_0 = arith.constant 0 : i32
    %c0_i32_1 = arith.constant 0 : i32
    return %c0_i32, %c0_i32_0 : i32, i32
  }
  func.func @transform_4(%arg0: i32) -> (i32, i32) {
    %c0_i32 = arith.constant 0 : i32
    %c0_i32_0 = arith.constant 0 : i32
    %c0_i32_1 = arith.constant 0 : i32
    return %c0_i32, %c0_i32_0 : i32, i32
  }
  func.func @transform_5(%arg0: i32) -> (i32, i32) {
    %c0_i32 = arith.constant 0 : i32
    %c0_i32_0 = arith.constant 0 : i32
    %c0_i32_1 = arith.constant 0 : i32
    return %c0_i32, %c0_i32_0 : i32, i32
  }
  func.func @transform_6(%arg0: i32) -> (i32, i32) {
    %c0_i32 = arith.constant 0 : i32
    %c0_i32_0 = arith.constant 0 : i32
    return %arg0, %c0_i32 : i32, i32
  }
}

module attributes {stable_mosaic.version = 11 : i64} {
  func.func @gru_cell_kernel(%arg0: i32, %arg1: memref<8x128xf32, #tpu.memory_space<vmem>>, %arg2: memref<8x128xf32, #tpu.memory_space<vmem>>, %arg3: memref<128x384xf32, #tpu.memory_space<vmem>>, %arg4: memref<128x256xf32, #tpu.memory_space<vmem>>, %arg5: memref<128x128xf32, #tpu.memory_space<vmem>>, %arg6: memref<1x384xf32, #tpu.memory_space<vmem>>, %arg7: memref<8x128xf32, #tpu.memory_space<vmem>>) attributes {dimension_semantics = [#tpu.dimension_semantics<arbitrary>], iteration_bounds = array<i64: 1>, scalar_prefetch = 0 : i64, scratch_operands = 0 : i64, tpu.core_type = #tpu.core_type<tc>, window_params = [{transform_indices = @transform_0, window_bounds = array<i64: 8, 128>}, {transform_indices = @transform_1, window_bounds = array<i64: 8, 128>}, {pipeline_mode = #tpu.pipeline_mode<synchronous>, transform_indices = @transform_2, window_bounds = array<i64: 128, 384>}, {pipeline_mode = #tpu.pipeline_mode<synchronous>, transform_indices = @transform_3, window_bounds = array<i64: 128, 256>}, {pipeline_mode = #tpu.pipeline_mode<synchronous>, transform_indices = @transform_4, window_bounds = array<i64: 128, 128>}, {pipeline_mode = #tpu.pipeline_mode<synchronous>, transform_indices = @transform_5, window_bounds = array<i64: 1, 384>}, {transform_indices = @transform_6, window_bounds = array<i64: 8, 128>}]} {
    %c0 = arith.constant 0 : index
    %c0_0 = arith.constant 0 : index
    %0 = vector.load %arg1[%c0, %c0_0] : memref<8x128xf32, #tpu.memory_space<vmem>>, vector<8x128xf32>
    %c0_1 = arith.constant 0 : index
    %c0_2 = arith.constant 0 : index
    %1 = vector.load %arg2[%c0_1, %c0_2] : memref<8x128xf32, #tpu.memory_space<vmem>>, vector<8x128xf32>
    %c0_3 = arith.constant 0 : index
    %c0_4 = arith.constant 0 : index
    %2 = vector.load %arg3[%c0_3, %c0_4] : memref<128x384xf32, #tpu.memory_space<vmem>>, vector<128x384xf32>
    %cst = arith.constant dense<0.000000e+00> : vector<8x384xf32>
    %3 = tpu.matmul %0, %2, %cst {dimension_numbers = #tpu.dot_dimension_numbers<[1], [0], [0], [1], [0, 0, 1, 1], [], []>} : vector<8x128xf32>, vector<128x384xf32>, vector<8x384xf32> -> vector<8x384xf32>
    %c0_5 = arith.constant 0 : index
    %c0_6 = arith.constant 0 : index
    %4 = vector.load %arg6[%c0_5, %c0_6] : memref<1x384xf32, #tpu.memory_space<vmem>>, vector<1x384xf32>
    %5 = vector.broadcast %4 : vector<1x384xf32> to vector<8x384xf32>
    %6 = arith.addf %3, %5 : vector<8x384xf32>
    %c0_7 = arith.constant 0 : index
    %c0_8 = arith.constant 0 : index
    %7 = vector.load %arg4[%c0_7, %c0_8] : memref<128x256xf32, #tpu.memory_space<vmem>>, vector<128x256xf32>
    %cst_9 = arith.constant dense<0.000000e+00> : vector<8x256xf32>
    %8 = tpu.matmul %1, %7, %cst_9 {dimension_numbers = #tpu.dot_dimension_numbers<[1], [0], [0], [1], [0, 0, 1, 1], [], []>} : vector<8x128xf32>, vector<128x256xf32>, vector<8x256xf32> -> vector<8x256xf32>
    %9 = vector.extract_strided_slice %6 {offsets = [0, 0], sizes = [8, 256], strides = [1, 1]} : vector<8x384xf32> to vector<8x256xf32>
    %10 = arith.addf %9, %8 : vector<8x256xf32>
    %11 = arith.negf %10 : vector<8x256xf32>
    %12 = math.exp %11 : vector<8x256xf32>
    %cst_10 = arith.constant 1.000000e+00 : f32
    %13 = vector.broadcast %cst_10 : f32 to vector<8x256xf32>
    %14 = arith.addf %13, %12 : vector<8x256xf32>
    %15 = arith.divf %13, %14 : vector<8x256xf32>
    %16 = vector.extract_strided_slice %15 {offsets = [0, 0], sizes = [8, 128], strides = [1, 1]} : vector<8x256xf32> to vector<8x128xf32>
    %17 = vector.extract_strided_slice %15 {offsets = [0, 128], sizes = [8, 128], strides = [1, 1]} : vector<8x256xf32> to vector<8x128xf32>
    %18 = arith.mulf %17, %1 : vector<8x128xf32>
    %19 = vector.extract_strided_slice %6 {offsets = [0, 256], sizes = [8, 128], strides = [1, 1]} : vector<8x384xf32> to vector<8x128xf32>
    %c0_11 = arith.constant 0 : index
    %c0_12 = arith.constant 0 : index
    %20 = vector.load %arg5[%c0_11, %c0_12] : memref<128x128xf32, #tpu.memory_space<vmem>>, vector<128x128xf32>
    %cst_13 = arith.constant dense<0.000000e+00> : vector<8x128xf32>
    %21 = tpu.matmul %18, %20, %cst_13 {dimension_numbers = #tpu.dot_dimension_numbers<[1], [0], [0], [1], [0, 0, 1, 1], [], []>} : vector<8x128xf32>, vector<128x128xf32>, vector<8x128xf32> -> vector<8x128xf32>
    %22 = arith.addf %19, %21 : vector<8x128xf32>
    %23 = math.tanh %22 : vector<8x128xf32>
    %24 = arith.subf %23, %1 : vector<8x128xf32>
    %25 = arith.mulf %16, %24 : vector<8x128xf32>
    %26 = arith.addf %1, %25 : vector<8x128xf32>
    %c0_14 = arith.constant 0 : index
    %c0_15 = arith.constant 0 : index
    %27 = vector.load %arg7[%c0_14, %c0_15] : memref<8x128xf32, #tpu.memory_space<vmem>>, vector<8x128xf32>
    tpu.vector_store %arg7[%c0_14, %c0_15], %26 {strides = array<i32>} : memref<8x128xf32, #tpu.memory_space<vmem>>, vector<8x128xf32>,
    return
  }
  func.func @transform_0(%arg0: i32) -> (i32, i32) {
    %c0_i32 = arith.constant 0 : i32
    %c0_i32_0 = arith.constant 0 : i32
    return %arg0, %c0_i32 : i32, i32
  }
  func.func @transform_1(%arg0: i32) -> (i32, i32) {
    %c0_i32 = arith.constant 0 : i32
    %c0_i32_0 = arith.constant 0 : i32
    return %arg0, %c0_i32 : i32, i32
  }
  func.func @transform_2(%arg0: i32) -> (i32, i32) {
    %c0_i32 = arith.constant 0 : i32
    %c0_i32_0 = arith.constant 0 : i32
    %c0_i32_1 = arith.constant 0 : i32
    return %c0_i32, %c0_i32_0 : i32, i32
  }
  func.func @transform_3(%arg0: i32) -> (i32, i32) {
    %c0_i32 = arith.constant 0 : i32
    %c0_i32_0 = arith.constant 0 : i32
    %c0_i32_1 = arith.constant 0 : i32
    return %c0_i32, %c0_i32_0 : i32, i32
  }
  func.func @transform_4(%arg0: i32) -> (i32, i32) {
    %c0_i32 = arith.constant 0 : i32
    %c0_i32_0 = arith.constant 0 : i32
    %c0_i32_1 = arith.constant 0 : i32
    return %c0_i32, %c0_i32_0 : i32, i32
  }
  func.func @transform_5(%arg0: i32) -> (i32, i32) {
    %c0_i32 = arith.constant 0 : i32
    %c0_i32_0 = arith.constant 0 : i32
    %c0_i32_1 = arith.constant 0 : i32
    return %c0_i32, %c0_i32_0 : i32, i32
  }
  func.func @transform_6(%arg0: i32) -> (i32, i32) {
    %c0_i32 = arith.constant 0 : i32
    %c0_i32_0 = arith.constant 0 : i32
    return %arg0, %c0_i32 : i32, i32
  }
}

</mosaic_0001>

<llo_original>
// kernel: tpu_custom_call.1
$region0: #{tpu_custom_call.1}
  #allocation0 [shape = 'u32[]', space=smem, size = 0x4, offset = 0x4, fixed_abs, tag = 'smem constant byte address 0x4 - core index']
  #allocation1 [shape = 'u32[72,128]{1,0:T(1,128)}', space=vmem, size = 0x9000, scoped, tag = 'internal scratch']
  %s0 = inlined_call_operand.hbm [shape: f32[8,128], index: 0, kind: input, shape index: {}]
  %s1 = inlined_call_operand.hbm [shape: f32[8,128], index: 1, kind: input, shape index: {}]
  %s2 = inlined_call_operand.hbm [shape: f32[128,384], index: 2, kind: input, shape index: {}]
  %s3 = inlined_call_operand.hbm [shape: f32[128,256], index: 3, kind: input, shape index: {}]
  %s4 = inlined_call_operand.hbm [shape: f32[128,128], index: 4, kind: input, shape index: {}]
  %s5 = inlined_call_operand.vmem [shape: f32[1,384], index: 5, kind: input, shape index: {}]
  %s6 = inlined_call_operand.hbm [shape: f32[8,128], index: 6, kind: output, shape index: {}]
  %s7 = sld [smem:[#allocation0]]
  $region54: #{tpu_custom_call.1} parent=0
    _
  %s9 = ssub.s32 1, %s7
  %s10 = scalar_select 0, %s9, %s7
  $region1: #{tpu_custom_call.1} parent=0
    #allocation2 [shape = 'u8[4096]{0}', space=vmem, size = 0x1000, scoped, tag = 'input window, operand 0, single buffered']
    #allocation3 [shape = 's32[1]{0}', space=sflag, size = 0x4, scoped, tag = 'scoped memory for tpu_custom_call.1']
    #allocation4 [shape = 's32[1]{0}', space=sflag, size = 0x4, scoped, tag = 'scoped memory for tpu_custom_call.1']
    #allocation5 [shape = 'u8[4096]{0}', space=vmem, size = 0x1000, scoped, tag = 'input window, operand 1, single buffered']
    #allocation6 [shape = 's32[1]{0}', space=sflag, size = 0x4, scoped, tag = 'scoped memory for tpu_custom_call.1']
    #allocation7 [shape = 'u8[196608]{0}', space=vmem, size = 0x30000, scoped, tag = 'input window, operand 2, single buffered']
    #allocation8 [shape = 'u8[131072]{0}', space=vmem, size = 0x20000, scoped, tag = 'input window, operand 3, single buffered']
    #allocation9 [shape = 's32[1]{0}', space=sflag, size = 0x4, scoped, tag = 'scoped memory for tpu_custom_call.1']
    #allocation10 [shape = 'u8[65536]{0}', space=vmem, size = 0x10000, scoped, tag = 'input window, operand 4, single buffered']
    #allocation11 [shape = 'u8[4096]{0}', space=vmem, size = 0x1000, scoped, tag = 'output window, operand 0, single buffered']
    %11 = vsyncpa [#allocation3], 0
    %12 = vsyncpa [#allocation6], 0
    %13 = vsyncpa [#allocation9], 0
    %14 = vsyncpa [#allocation4], 0
    // Predicated region
    $region2: #{tpu_custom_call.1} parent=1 // pred_check
      _
    $region3: #{tpu_custom_call.1} parent=1 // pred_check_branch
      %16 = sbr.rel (0) target = $region5
    $region4: #{tpu_custom_call.1} parent=1 // pred_region
      %18 = vsyncadd [#allocation3], 0
      %s20 = sshll.u32 %s0, 4
      %s21 = int_to_ptr.hbm [resolvable:$true] %s20
      %s22 = sshll.u32 [#allocation2], 4
      %s23 = int_to_ptr.vmem [resolvable:$true] %s22
      %25 = dma.hbm_to_vmem [thread:$0]  %s21, 128, %s23, [#allocation3]
    $region5: #{tpu_custom_call.1} parent=1 // pred_fallthru
      _
    // Predicated region
    $region6: #{tpu_custom_call.1} parent=1 // pred_check
      _
    $region7: #{tpu_custom_call.1} parent=1 // pred_check_branch
      %27 = sbr.rel (0) target = $region9
    $region8: #{tpu_custom_call.1} parent=1 // pred_region
      %29 = vsyncadd [#allocation6], 0
      %s31 = sshll.u32 %s1, 4
      %s32 = int_to_ptr.hbm [resolvable:$true] %s31
      %s33 = sshll.u32 [#allocation5], 4
      %s34 = int_to_ptr.vmem [resolvable:$true] %s33
      %36 = dma.hbm_to_vmem [thread:$0]  %s32, 128, %s34, [#allocation6]
    $region9: #{tpu_custom_call.1} parent=1 // pred_fallthru
      _
    // Predicated region
    $region10: #{tpu_custom_call.1} parent=1 // pred_check
      _
    $region11: #{tpu_custom_call.1} parent=1 // pred_check_branch
      %38 = sbr.rel (0) target = $region13
    $region12: #{tpu_custom_call.1} parent=1 // pred_region
      %40 = vsyncadd [#allocation6], 0
      %s41 = sshll.u32 %s2, 4
      %s42 = int_to_ptr.hbm [resolvable:$true] %s41
      %s43 = sshll.u32 [#allocation7], 4
      %s44 = int_to_ptr.vmem [resolvable:$true] %s43
      %49 = dma.hbm_to_vmem [thread:$0]  %s42, 6144, %s44, [#allocation6], 384, 384, 24
    $region13: #{tpu_custom_call.1} parent=1 // pred_fallthru
      _
    // Predicated region
    $region14: #{tpu_custom_call.1} parent=1 // pred_check
      _
    $region15: #{tpu_custom_call.1} parent=1 // pred_check_branch
      %51 = sbr.rel (0) target = $region17
    $region16: #{tpu_custom_call.1} parent=1 // pred_region
      %53 = vsyncadd [#allocation9], 0
      %s54 = sshll.u32 %s3, 4
      %s55 = int_to_ptr.hbm [resolvable:$true] %s54
      %s56 = sshll.u32 [#allocation8], 4
      %s57 = int_to_ptr.vmem [resolvable:$true] %s56
      %62 = dma.hbm_to_vmem [thread:$0]  %s55, 4096, %s57, [#allocation9], 256, 256, 16
    $region17: #{tpu_custom_call.1} parent=1 // pred_fallthru
      _
    // Predicated region
    $region18: #{tpu_custom_call.1} parent=1 // pred_check
      _
    $region19: #{tpu_custom_call.1} parent=1 // pred_check_branch
      %64 = sbr.rel (0) target = $region21
    $region20: #{tpu_custom_call.1} parent=1 // pred_region
      %66 = vsyncadd [#allocation9], 0
      %s67 = sshll.u32 %s4, 4
      %s68 = int_to_ptr.hbm [resolvable:$true] %s67
      %s69 = sshll.u32 [#allocation10], 4
      %s70 = int_to_ptr.vmem [resolvable:$true] %s69
      %75 = dma.hbm_to_vmem [thread:$0]  %s68, 2048, %s70, [#allocation9], 128, 128, 8
    $region21: #{tpu_custom_call.1} parent=1 // pred_fallthru
      _
    // Predicated region
    $region22: #{tpu_custom_call.1} parent=1 // pred_check
      _
    $region23: #{tpu_custom_call.1} parent=1 // pred_check_branch
      %77 = sbr.rel (0) target = $region25
    $region24: #{tpu_custom_call.1} parent=1 // pred_region
      _
    $region25: #{tpu_custom_call.1} parent=1 // pred_fallthru
      _
    // Predicated region
    $region26: #{tpu_custom_call.1} parent=1 // pred_check
      _
    $region27: #{tpu_custom_call.1} parent=1 // pred_check_branch
      %79 = sbr.rel (0) target = $region29
    $region28: #{tpu_custom_call.1} parent=1 // pred_region
      %81 = dma.done [#allocation3], 128
    $region29: #{tpu_custom_call.1} parent=1 // pred_fallthru
      _
    // Predicated region
    $region30: #{tpu_custom_call.1} parent=1 // pred_check
      _
    $region31: #{tpu_custom_call.1} parent=1 // pred_check_branch
      %83 = sbr.rel (0) target = $region33
    $region32: #{tpu_custom_call.1} parent=1 // pred_region
      %85 = dma.done [#allocation6], 128
    $region33: #{tpu_custom_call.1} parent=1 // pred_fallthru
      _
    // Predicated region
    $region34: #{tpu_custom_call.1} parent=1 // pred_check
      _
    $region35: #{tpu_custom_call.1} parent=1 // pred_check_branch
      %87 = sbr.rel (0) target = $region37
    $region36: #{tpu_custom_call.1} parent=1 // pred_region
      %89 = dma.done [#allocation6], 6144
    $region37: #{tpu_custom_call.1} parent=1 // pred_fallthru
      _
    // Predicated region
    $region38: #{tpu_custom_call.1} parent=1 // pred_check
      _
    $region39: #{tpu_custom_call.1} parent=1 // pred_check_branch
      %91 = sbr.rel (0) target = $region41
    $region40: #{tpu_custom_call.1} parent=1 // pred_region
      %93 = dma.done [#allocation9], 4096
    $region41: #{tpu_custom_call.1} parent=1 // pred_fallthru
      _
    // Predicated region
    $region42: #{tpu_custom_call.1} parent=1 // pred_check
      _
    $region43: #{tpu_custom_call.1} parent=1 // pred_check_branch
      %95 = sbr.rel (0) target = $region45
    $region44: #{tpu_custom_call.1} parent=1 // pred_region
      %97 = dma.done [#allocation9], 2048
    $region45: #{tpu_custom_call.1} parent=1 // pred_fallthru
      _
    %v98 = vld [vmem:[#allocation2] sm:$0xff]
    %v99 = vld [vmem:[#allocation5] sm:$0xff]
    %v100 = vld [vmem:[#allocation7] sm:$0xff]
    %v101 = vld [vmem:[#allocation7 + $0x8] sm:$0xff]
    %v102 = vld [vmem:[#allocation7 + $0x10] sm:$0xff]
    %v103 = vld [vmem:[#allocation7 + $0x18] sm:$0xff]
    %v104 = vld [vmem:[#allocation7 + $0x20] sm:$0xff]
    %v105 = vld [vmem:[#allocation7 + $0x28] sm:$0xff]
    %v106 = vld [vmem:[#allocation7 + $0x30] sm:$0xff]
    %v107 = vld [vmem:[#allocation7 + $0x38] sm:$0xff]
    %v108 = vld [vmem:[#allocation7 + $0x40] sm:$0xff]
    %v109 = vld [vmem:[#allocation7 + $0x48] sm:$0xff]
    %v110 = vld [vmem:[#allocation7 + $0x50] sm:$0xff]
    %v111 = vld [vmem:[#allocation7 + $0x58] sm:$0xff]
    %v112 = vld [vmem:[#allocation7 + $0x60] sm:$0xff]
    %v113 = vld [vmem:[#allocation7 + $0x68] sm:$0xff]
    %v114 = vld [vmem:[#allocation7 + $0x70] sm:$0xff]
    %v115 = vld [vmem:[#allocation7 + $0x78] sm:$0xff]
    %v116 = vld [vmem:[#allocation7 + $0x80] sm:$0xff]
    %v117 = vld [vmem:[#allocation7 + $0x88] sm:$0xff]
    %v118 = vld [vmem:[#allocation7 + $0x90] sm:$0xff]
    %v119 = vld [vmem:[#allocation7 + $0x98] sm:$0xff]
    %v120 = vld [vmem:[#allocation7 + $0xa0] sm:$0xff]
    %v121 = vld [vmem:[#allocation7 + $0xa8] sm:$0xff]
    %v122 = vld [vmem:[#allocation7 + $0xb0] sm:$0xff]
    %v123 = vld [vmem:[#allocation7 + $0xb8] sm:$0xff]
    %v124 = vld [vmem:[#allocation7 + $0xc0] sm:$0xff]
    %v125 = vld [vmem:[#allocation7 + $0xc8] sm:$0xff]
    %v126 = vld [vmem:[#allocation7 + $0xd0] sm:$0xff]
    %v127 = vld [vmem:[#allocation7 + $0xd8] sm:$0xff]
    %v128 = vld [vmem:[#allocation7 + $0xe0] sm:$0xff]
    %v129 = vld [vmem:[#allocation7 + $0xe8] sm:$0xff]
    %v130 = vld [vmem:[#allocation7 + $0xf0] sm:$0xff]
    %v131 = vld [vmem:[#allocation7 + $0xf8] sm:$0xff]
    %v132 = vld [vmem:[#allocation7 + $0x100] sm:$0xff]
    %v133 = vld [vmem:[#allocation7 + $0x108] sm:$0xff]
    %v134 = vld [vmem:[#allocation7 + $0x110] sm:$0xff]
    %v135 = vld [vmem:[#allocation7 + $0x118] sm:$0xff]
    %v136 = vld [vmem:[#allocation7 + $0x120] sm:$0xff]
    %v137 = vld [vmem:[#allocation7 + $0x128] sm:$0xff]
    %v138 = vld [vmem:[#allocation7 + $0x130] sm:$0xff]
    %v139 = vld [vmem:[#allocation7 + $0x138] sm:$0xff]
    %v140 = vld [vmem:[#allocation7 + $0x140] sm:$0xff]
    %v141 = vld [vmem:[#allocation7 + $0x148] sm:$0xff]
    %v142 = vld [vmem:[#allocation7 + $0x150] sm:$0xff]
    %v143 = vld [vmem:[#allocation7 + $0x158] sm:$0xff]
    %v144 = vld [vmem:[#allocation7 + $0x160] sm:$0xff]
    %v145 = vld [vmem:[#allocation7 + $0x168] sm:$0xff]
    %v146 = vld [vmem:[#allocation7 + $0x170] sm:$0xff]
    %v147 = vld [vmem:[#allocation7 + $0x178] sm:$0xff]
    %v148 = vld [vmem:[%s5] sm:$0x7]
    %v150 = vperm.slane %v148, 0
    %v151 = vperm.slane %v148, 1
    %v152 = vperm.slane %v148, 2
    %156 = vmatpush.msra.mxu0 %v145
    %157 = vmatpush.msra.mxu0 %v142
    %158 = vmatpush.msra.mxu0 %v139
    %159 = vmatpush.msra.mxu0 %v136
    %160 = vmatpush.msra.mxu0 %v133
    %161 = vmatpush.msra.mxu0 %v130
    %162 = vmatpush.msra.mxu0 %v127
    %163 = vmatpush.msra.mxu0 %v124
    %164 = vmatpush.msra.mxu0 %v121
    %165 = vmatpush.msra.mxu0 %v118
    %166 = vmatpush.msra.mxu0 %v115
    %167 = vmatpush.msra.mxu0 %v112
    %168 = vmatpush.msra.mxu0 %v109
    %169 = vmatpush.msra.mxu0 %v106
    %170 = vmatpush.msra.mxu0 %v103
    %171 = vmatpush.msra.mxu0 %v100
    %172 = vmatmul.f32.gmra.mxu0 %v98
    %v173 = vpop.f32.mrf.mxu0
    %v174 = vadd.f32 %v150, %v173
    %175 = vdwg.mxu0
    %176 = vmatpush.msra.mxu0 %v146
    %177 = vmatpush.msra.mxu0 %v143
    %178 = vmatpush.msra.mxu0 %v140
    %179 = vmatpush.msra.mxu0 %v137
    %180 = vmatpush.msra.mxu0 %v134
    %181 = vmatpush.msra.mxu0 %v131
    %182 = vmatpush.msra.mxu0 %v128
    %183 = vmatpush.msra.mxu0 %v125
    %184 = vmatpush.msra.mxu0 %v122
    %185 = vmatpush.msra.mxu0 %v119
    %186 = vmatpush.msra.mxu0 %v116
    %187 = vmatpush.msra.mxu0 %v113
    %188 = vmatpush.msra.mxu0 %v110
    %189 = vmatpush.msra.mxu0 %v107
    %190 = vmatpush.msra.mxu0 %v104
    %191 = vmatpush.msra.mxu0 %v101
    %192 = vmatmul.f32.gmra.mxu0 %v98
    %v193 = vpop.f32.mrf.mxu0
    %v194 = vadd.f32 %v151, %v193
    %195 = vdwg.mxu0
    %196 = vmatpush.msra.mxu0 %v147
    %197 = vmatpush.msra.mxu0 %v144
    %198 = vmatpush.msra.mxu0 %v141
    %199 = vmatpush.msra.mxu0 %v138
    %200 = vmatpush.msra.mxu0 %v135
    %201 = vmatpush.msra.mxu0 %v132
    %202 = vmatpush.msra.mxu0 %v129
    %203 = vmatpush.msra.mxu0 %v126
    %204 = vmatpush.msra.mxu0 %v123
    %205 = vmatpush.msra.mxu0 %v120
    %206 = vmatpush.msra.mxu0 %v117
    %207 = vmatpush.msra.mxu0 %v114
    %208 = vmatpush.msra.mxu0 %v111
    %209 = vmatpush.msra.mxu0 %v108
    %210 = vmatpush.msra.mxu0 %v105
    %211 = vmatpush.msra.mxu0 %v102
    %212 = vmatmul.f32.gmra.mxu0 %v98
    %v213 = vpop.f32.mrf.mxu0
    %v214 = vadd.f32 %v152, %v213
    %215 = vdwg.mxu0
    %v216 = vld [vmem:[#allocation8] sm:$0xff]
    %v217 = vld [vmem:[#allocation8 + $0x8] sm:$0xff]
    %v218 = vld [vmem:[#allocation8 + $0x10] sm:$0xff]
    %v219 = vld [vmem:[#allocation8 + $0x18] sm:$0xff]
    %v220 = vld [vmem:[#allocation8 + $0x20] sm:$0xff]
    %v221 = vld [vmem:[#allocation8 + $0x28] sm:$0xff]
    %v222 = vld [vmem:[#allocation8 + $0x30] sm:$0xff]
    %v223 = vld [vmem:[#allocation8 + $0x38] sm:$0xff]
    %v224 = vld [vmem:[#allocation8 + $0x40] sm:$0xff]
    %v225 = vld [vmem:[#allocation8 + $0x48] sm:$0xff]
    %v226 = vld [vmem:[#allocation8 + $0x50] sm:$0xff]
    %v227 = vld [vmem:[#allocation8 + $0x58] sm:$0xff]
    %v228 = vld [vmem:[#allocation8 + $0x60] sm:$0xff]
    %v229 = vld [vmem:[#allocation8 + $0x68] sm:$0xff]
    %v230 = vld [vmem:[#allocation8 + $0x70] sm:$0xff]
    %v231 = vld [vmem:[#allocation8 + $0x78] sm:$0xff]
    %v232 = vld [vmem:[#allocation8 + $0x80] sm:$0xff]
    %v233 = vld [vmem:[#allocation8 + $0x88] sm:$0xff]
    %v234 = vld [vmem:[#allocation8 + $0x90] sm:$0xff]
    %v235 = vld [vmem:[#allocation8 + $0x98] sm:$0xff]
    %v236 = vld [vmem:[#allocation8 + $0xa0] sm:$0xff]
    %v237 = vld [vmem:[#allocation8 + $0xa8] sm:$0xff]
    %v238 = vld [vmem:[#allocation8 + $0xb0] sm:$0xff]
    %v239 = vld [vmem:[#allocation8 + $0xb8] sm:$0xff]
    %v240 = vld [vmem:[#allocation8 + $0xc0] sm:$0xff]
    %v241 = vld [vmem:[#allocation8 + $0xc8] sm:$0xff]
    %v242 = vld [vmem:[#allocation8 + $0xd0] sm:$0xff]
    %v243 = vld [vmem:[#allocation8 + $0xd8] sm:$0xff]
    %v244 = vld [vmem:[#allocation8 + $0xe0] sm:$0xff]
    %v245 = vld [vmem:[#allocation8 + $0xe8] sm:$0xff]
    %v246 = vld [vmem:[#allocation8 + $0xf0] sm:$0xff]
    %v247 = vld [vmem:[#allocation8 + $0xf8] sm:$0xff]
    %248 = vmatpush.msra.mxu0 %v246
    %249 = vmatpush.msra.mxu0 %v244
    %250 = vmatpush.msra.mxu0 %v242
    %251 = vmatpush.msra.mxu0 %v240
    %252 = vmatpush.msra.mxu0 %v238
    %253 = vmatpush.msra.mxu0 %v236
    %254 = vmatpush.msra.mxu0 %v234
    %255 = vmatpush.msra.mxu0 %v232
    %256 = vmatpush.msra.mxu0 %v230
    %257 = vmatpush.msra.mxu0 %v228
    %258 = vmatpush.msra.mxu0 %v226
    %259 = vmatpush.msra.mxu0 %v224
    %260 = vmatpush.msra.mxu0 %v222
    %261 = vmatpush.msra.mxu0 %v220
    %262 = vmatpush.msra.mxu0 %v218
    %263 = vmatpush.msra.mxu0 %v216
    %264 = vmatmul.f32.gmra.mxu0 %v99
    %v265 = vpop.f32.mrf.mxu0
    %v266 = vadd.f32 0.0, %v265
    %267 = vdwg.mxu0
    %268 = vmatpush.msra.mxu0 %v247
    %269 = vmatpush.msra.mxu0 %v245
    %270 = vmatpush.msra.mxu0 %v243
    %271 = vmatpush.msra.mxu0 %v241
    %272 = vmatpush.msra.mxu0 %v239
    %273 = vmatpush.msra.mxu0 %v237
    %274 = vmatpush.msra.mxu0 %v235
    %275 = vmatpush.msra.mxu0 %v233
    %276 = vmatpush.msra.mxu0 %v231
    %277 = vmatpush.msra.mxu0 %v229
    %278 = vmatpush.msra.mxu0 %v227
    %279 = vmatpush.msra.mxu0 %v225
    %280 = vmatpush.msra.mxu0 %v223
    %281 = vmatpush.msra.mxu0 %v221
    %282 = vmatpush.msra.mxu0 %v219
    %283 = vmatpush.msra.mxu0 %v217
    %284 = vmatmul.f32.gmra.mxu0 %v99
    %v285 = vpop.f32.mrf.mxu0
    %v286 = vadd.f32 0.0, %v285
    %287 = vdwg.mxu0
    %v288 = vadd.f32 %v174, %v266
    %v289 = vadd.f32 %v194, %v286
    %v290 = vxor.u32 %v288, 2147483648
    %v291 = vxor.u32 %v289, 2147483648
    %v292 = vmul.f32 %v290, 1.442695
    %v293 = vpow.pop %v292
    %v294 = vmul.f32 %v291, 1.442695
    %v295 = vpow.pop %v294
    %v296 = vadd.f32 %v293, 1.0
    %v297 = vadd.f32 %v295, 1.0
    %v298 = vrcp.pop %v296
    %v299 = vmul.f32 %v296, %v298
    %v300 = vsub.f32 1.0, %v299
    %v301 = vmul.f32 %v298, %v300
    %v302 = vadd.f32 %v298, %v301
    %vm303 = vweird.f32 %v296
    %vm304 = vweird.f32 %v298
    %vm305 = vmor %vm303, %vm304
    %v306 = vsel %vm305, %v298, %v302
    %v307 = vand.u32 2147483647, %v296
    %vm308 = vcmp.eq.f32.partialorder %v307, 8.507059e+37
    %v309 = vand.u32 %v296, 2147483648
    %v310 = vor.u32 1.1754944e-38, %v309
    %v311 = vsel %vm308, %v310, %v306
    %v312 = vmul.f32 1.0, %v311
    %v313 = vrcp.pop %v297
    %v314 = vmul.f32 %v297, %v313
    %v315 = vsub.f32 1.0, %v314
    %v316 = vmul.f32 %v313, %v315
    %v317 = vadd.f32 %v313, %v316
    %vm318 = vweird.f32 %v297
    %vm319 = vweird.f32 %v313
    %vm320 = vmor %vm318, %vm319
    %v321 = vsel %vm320, %v313, %v317
    %v322 = vand.u32 2147483647, %v297
    %vm323 = vcmp.eq.f32.partialorder %v322, 8.507059e+37
    %v324 = vand.u32 %v297, 2147483648
    %v325 = vor.u32 1.1754944e-38, %v324
    %v326 = vsel %vm323, %v325, %v321
    %v327 = vmul.f32 1.0, %v326
    %v328 = vmul.f32 %v327, %v99
    %v329 = vld [vmem:[#allocation10] sm:$0xff]
    %v330 = vld [vmem:[#allocation10 + $0x8] sm:$0xff]
    %v331 = vld [vmem:[#allocation10 + $0x10] sm:$0xff]
    %v332 = vld [vmem:[#allocation10 + $0x18] sm:$0xff]
    %v333 = vld [vmem:[#allocation10 + $0x20] sm:$0xff]
    %v334 = vld [vmem:[#allocation10 + $0x28] sm:$0xff]
    %v335 = vld [vmem:[#allocation10 + $0x30] sm:$0xff]
    %v336 = vld [vmem:[#allocation10 + $0x38] sm:$0xff]
    %v337 = vld [vmem:[#allocation10 + $0x40] sm:$0xff]
    %v338 = vld [vmem:[#allocation10 + $0x48] sm:$0xff]
    %v339 = vld [vmem:[#allocation10 + $0x50] sm:$0xff]
    %v340 = vld [vmem:[#allocation10 + $0x58] sm:$0xff]
    %v341 = vld [vmem:[#allocation10 + $0x60] sm:$0xff]
    %v342 = vld [vmem:[#allocation10 + $0x68] sm:$0xff]
    %v343 = vld [vmem:[#allocation10 + $0x70] sm:$0xff]
    %v344 = vld [vmem:[#allocation10 + $0x78] sm:$0xff]
    %345 = vmatpush.msra.mxu0 %v344
    %346 = vmatpush.msra.mxu0 %v343
    %347 = vmatpush.msra.mxu0 %v342
    %348 = vmatpush.msra.mxu0 %v341
    %349 = vmatpush.msra.mxu0 %v340
    %350 = vmatpush.msra.mxu0 %v339
    %351 = vmatpush.msra.mxu0 %v338
    %352 = vmatpush.msra.mxu0 %v337
    %353 = vmatpush.msra.mxu0 %v336
    %354 = vmatpush.msra.mxu0 %v335
    %355 = vmatpush.msra.mxu0 %v334
    %356 = vmatpush.msra.mxu0 %v333
    %357 = vmatpush.msra.mxu0 %v332
    %358 = vmatpush.msra.mxu0 %v331
    %359 = vmatpush.msra.mxu0 %v330
    %360 = vmatpush.msra.mxu0 %v329
    %361 = vmatmul.f32.gmra.mxu0 %v328
    %v362 = vpop.f32.mrf.mxu0
    %v363 = vadd.f32 0.0, %v362
    %364 = vdwg.mxu0
    %v365 = vadd.f32 %v214, %v363
    %v366 = vtanh.pop %v365
    %v367 = vsub.f32 %v366, %v99
    %v368 = vmul.f32 %v312, %v367
    %v369 = vadd.f32 %v99, %v368
    %370 = vst [vmem:[#allocation11] sm:$0xff] %v369
    // Predicated region
    $region46: #{tpu_custom_call.1} parent=1 // pred_check
      _
    $region47: #{tpu_custom_call.1} parent=1 // pred_check_branch
      %372 = sbr.rel (0) target = $region49
    $region48: #{tpu_custom_call.1} parent=1 // pred_region
      %374 = vsyncadd [#allocation4], 0
      %s376 = sshll.u32 [#allocation11], 4
      %s377 = int_to_ptr.vmem [resolvable:$true] %s376
      %s378 = sshll.u32 %s6, 4
      %s379 = int_to_ptr.hbm [resolvable:$true] %s378
      %381 = dma.vmem_to_hbm [thread:$0]  %s377, 128, %s379, [#allocation4]
    $region49: #{tpu_custom_call.1} parent=1 // pred_fallthru
      _
    // Predicated region
    $region50: #{tpu_custom_call.1} parent=1 // pred_check
      _
    $region51: #{tpu_custom_call.1} parent=1 // pred_check_branch
      %383 = sbr.rel (0) target = $region53
    $region52: #{tpu_custom_call.1} parent=1 // pred_region
      %385 = dma.done [#allocation4], 128
    $region53: #{tpu_custom_call.1} parent=1 // pred_fallthru
      _
    %386 = vsyncpa [#allocation3], 1
    %387 = vsyncpa [#allocation6], 1
    %388 = vsyncpa [#allocation9], 1
    %389 = vsyncpa [#allocation4], 1

// kernel: tpu_custom_call.1
$region0: #{tpu_custom_call.1}
  #allocation0 [shape = 'u32[]', space=smem, size = 0x4, offset = 0x4, fixed_abs, tag = 'smem constant byte address 0x4 - core index']
  #allocation1 [shape = 'u32[72,128]{1,0:T(1,128)}', space=vmem, size = 0x9000, scoped, tag = 'internal scratch']
  %s0 = inlined_call_operand.hbm [shape: f32[8,128], index: 0, kind: input, shape index: {}]
  %s1 = inlined_call_operand.hbm [shape: f32[8,128], index: 1, kind: input, shape index: {}]
  %s2 = inlined_call_operand.hbm [shape: f32[128,384], index: 2, kind: input, shape index: {}]
  %s3 = inlined_call_operand.hbm [shape: f32[128,256], index: 3, kind: input, shape index: {}]
  %s4 = inlined_call_operand.hbm [shape: f32[128,128], index: 4, kind: input, shape index: {}]
  %s5 = inlined_call_operand.vmem [shape: f32[1,384], index: 5, kind: input, shape index: {}]
  %s6 = inlined_call_operand.hbm [shape: f32[8,128], index: 6, kind: output, shape index: {}]
  %s7 = sld [smem:[#allocation0]]
  $region54: #{tpu_custom_call.1} parent=0
    _
  %s9 = ssub.s32 1, %s7
  %s10 = scalar_select 0, %s9, %s7
  $region1: #{tpu_custom_call.1} parent=0
    #allocation2 [shape = 'u8[4096]{0}', space=vmem, size = 0x1000, scoped, tag = 'input window, operand 0, single buffered']
    #allocation3 [shape = 's32[1]{0}', space=sflag, size = 0x4, scoped, tag = 'scoped memory for tpu_custom_call.1']
    #allocation4 [shape = 's32[1]{0}', space=sflag, size = 0x4, scoped, tag = 'scoped memory for tpu_custom_call.1']
    #allocation5 [shape = 'u8[4096]{0}', space=vmem, size = 0x1000, scoped, tag = 'input window, operand 1, single buffered']
    #allocation6 [shape = 's32[1]{0}', space=sflag, size = 0x4, scoped, tag = 'scoped memory for tpu_custom_call.1']
    #allocation7 [shape = 'u8[196608]{0}', space=vmem, size = 0x30000, scoped, tag = 'input window, operand 2, single buffered']
    #allocation8 [shape = 'u8[131072]{0}', space=vmem, size = 0x20000, scoped, tag = 'input window, operand 3, single buffered']
    #allocation9 [shape = 's32[1]{0}', space=sflag, size = 0x4, scoped, tag = 'scoped memory for tpu_custom_call.1']
    #allocation10 [shape = 'u8[65536]{0}', space=vmem, size = 0x10000, scoped, tag = 'input window, operand 4, single buffered']
    #allocation11 [shape = 'u8[4096]{0}', space=vmem, size = 0x1000, scoped, tag = 'output window, operand 0, single buffered']
    %11 = vsyncpa [#allocation3], 0
    %12 = vsyncpa [#allocation6], 0
    %13 = vsyncpa [#allocation9], 0
    %14 = vsyncpa [#allocation4], 0
    // Predicated region
    $region2: #{tpu_custom_call.1} parent=1 // pred_check
      _
    $region3: #{tpu_custom_call.1} parent=1 // pred_check_branch
      %16 = sbr.rel (0) target = $region5
    $region4: #{tpu_custom_call.1} parent=1 // pred_region
      %18 = vsyncadd [#allocation3], 0
      %s20 = sshll.u32 %s0, 4
      %s21 = int_to_ptr.hbm [resolvable:$true] %s20
      %s22 = sshll.u32 [#allocation2], 4
      %s23 = int_to_ptr.vmem [resolvable:$true] %s22
      %25 = dma.hbm_to_vmem [thread:$0]  %s21, 128, %s23, [#allocation3]
    $region5: #{tpu_custom_call.1} parent=1 // pred_fallthru
      _
    // Predicated region
    $region6: #{tpu_custom_call.1} parent=1 // pred_check
      _
    $region7: #{tpu_custom_call.1} parent=1 // pred_check_branch
      %27 = sbr.rel (0) target = $region9
    $region8: #{tpu_custom_call.1} parent=1 // pred_region
      %29 = vsyncadd [#allocation6], 0
      %s31 = sshll.u32 %s1, 4
      %s32 = int_to_ptr.hbm [resolvable:$true] %s31
      %s33 = sshll.u32 [#allocation5], 4
      %s34 = int_to_ptr.vmem [resolvable:$true] %s33
      %36 = dma.hbm_to_vmem [thread:$0]  %s32, 128, %s34, [#allocation6]
    $region9: #{tpu_custom_call.1} parent=1 // pred_fallthru
      _
    // Predicated region
    $region10: #{tpu_custom_call.1} parent=1 // pred_check
      _
    $region11: #{tpu_custom_call.1} parent=1 // pred_check_branch
      %38 = sbr.rel (0) target = $region13
    $region12: #{tpu_custom_call.1} parent=1 // pred_region
      %40 = vsyncadd [#allocation6], 0
      %s41 = sshll.u32 %s2, 4
      %s42 = int_to_ptr.hbm [resolvable:$true] %s41
      %s43 = sshll.u32 [#allocation7], 4
      %s44 = int_to_ptr.vmem [resolvable:$true] %s43
      %49 = dma.hbm_to_vmem [thread:$0]  %s42, 6144, %s44, [#allocation6], 384, 384, 24
    $region13: #{tpu_custom_call.1} parent=1 // pred_fallthru
      _
    // Predicated region
    $region14: #{tpu_custom_call.1} parent=1 // pred_check
      _
    $region15: #{tpu_custom_call.1} parent=1 // pred_check_branch
      %51 = sbr.rel (0) target = $region17
    $region16: #{tpu_custom_call.1} parent=1 // pred_region
      %53 = vsyncadd [#allocation9], 0
      %s54 = sshll.u32 %s3, 4
      %s55 = int_to_ptr.hbm [resolvable:$true] %s54
      %s56 = sshll.u32 [#allocation8], 4
      %s57 = int_to_ptr.vmem [resolvable:$true] %s56
      %62 = dma.hbm_to_vmem [thread:$0]  %s55, 4096, %s57, [#allocation9], 256, 256, 16
    $region17: #{tpu_custom_call.1} parent=1 // pred_fallthru
      _
    // Predicated region
    $region18: #{tpu_custom_call.1} parent=1 // pred_check
      _
    $region19: #{tpu_custom_call.1} parent=1 // pred_check_branch
      %64 = sbr.rel (0) target = $region21
    $region20: #{tpu_custom_call.1} parent=1 // pred_region
      %66 = vsyncadd [#allocation9], 0
      %s67 = sshll.u32 %s4, 4
      %s68 = int_to_ptr.hbm [resolvable:$true] %s67
      %s69 = sshll.u32 [#allocation10], 4
      %s70 = int_to_ptr.vmem [resolvable:$true] %s69
      %75 = dma.hbm_to_vmem [thread:$0]  %s68, 2048, %s70, [#allocation9], 128, 128, 8
    $region21: #{tpu_custom_call.1} parent=1 // pred_fallthru
      _
    // Predicated region
    $region22: #{tpu_custom_call.1} parent=1 // pred_check
      _
    $region23: #{tpu_custom_call.1} parent=1 // pred_check_branch
      %77 = sbr.rel (0) target = $region25
    $region24: #{tpu_custom_call.1} parent=1 // pred_region
      _
    $region25: #{tpu_custom_call.1} parent=1 // pred_fallthru
      _
    // Predicated region
    $region26: #{tpu_custom_call.1} parent=1 // pred_check
      _
    $region27: #{tpu_custom_call.1} parent=1 // pred_check_branch
      %79 = sbr.rel (0) target = $region29
    $region28: #{tpu_custom_call.1} parent=1 // pred_region
      %81 = dma.done [#allocation3], 128
    $region29: #{tpu_custom_call.1} parent=1 // pred_fallthru
      _
    // Predicated region
    $region30: #{tpu_custom_call.1} parent=1 // pred_check
      _
    $region31: #{tpu_custom_call.1} parent=1 // pred_check_branch
      %83 = sbr.rel (0) target = $region33
    $region32: #{tpu_custom_call.1} parent=1 // pred_region
      %85 = dma.done [#allocation6], 128
    $region33: #{tpu_custom_call.1} parent=1 // pred_fallthru
      _
    // Predicated region
    $region34: #{tpu_custom_call.1} parent=1 // pred_check
      _
    $region35: #{tpu_custom_call.1} parent=1 // pred_check_branch
      %87 = sbr.rel (0) target = $region37
    $region36: #{tpu_custom_call.1} parent=1 // pred_region
      %89 = dma.done [#allocation6], 6144
    $region37: #{tpu_custom_call.1} parent=1 // pred_fallthru
      _
    // Predicated region
    $region38: #{tpu_custom_call.1} parent=1 // pred_check
      _
    $region39: #{tpu_custom_call.1} parent=1 // pred_check_branch
      %91 = sbr.rel (0) target = $region41
    $region40: #{tpu_custom_call.1} parent=1 // pred_region
      %93 = dma.done [#allocation9], 4096
    $region41: #{tpu_custom_call.1} parent=1 // pred_fallthru
      _
    // Predicated region
    $region42: #{tpu_custom_call.1} parent=1 // pred_check
      _
    $region43: #{tpu_custom_call.1} parent=1 // pred_check_branch
      %95 = sbr.rel (0) target = $region45
    $region44: #{tpu_custom_call.1} parent=1 // pred_region
      %97 = dma.done [#allocation9], 2048
    $region45: #{tpu_custom_call.1} parent=1 // pred_fallthru
      _
    %v98 = vld [vmem:[#allocation2] sm:$0xff]
    %v99 = vld [vmem:[#allocation5] sm:$0xff]
    %v100 = vld [vmem:[#allocation7] sm:$0xff]
    %v101 = vld [vmem:[#allocation7 + $0x8] sm:$0xff]
    %v102 = vld [vmem:[#allocation7 + $0x10] sm:$0xff]
    %v103 = vld [vmem:[#allocation7 + $0x18] sm:$0xff]
    %v104 = vld [vmem:[#allocation7 + $0x20] sm:$0xff]
    %v105 = vld [vmem:[#allocation7 + $0x28] sm:$0xff]
    %v106 = vld [vmem:[#allocation7 + $0x30] sm:$0xff]
    %v107 = vld [vmem:[#allocation7 + $0x38] sm:$0xff]
    %v108 = vld [vmem:[#allocation7 + $0x40] sm:$0xff]
    %v109 = vld [vmem:[#allocation7 + $0x48] sm:$0xff]
    %v110 = vld [vmem:[#allocation7 + $0x50] sm:$0xff]
    %v111 = vld [vmem:[#allocation7 + $0x58] sm:$0xff]
    %v112 = vld [vmem:[#allocation7 + $0x60] sm:$0xff]
    %v113 = vld [vmem:[#allocation7 + $0x68] sm:$0xff]
    %v114 = vld [vmem:[#allocation7 + $0x70] sm:$0xff]
    %v115 = vld [vmem:[#allocation7 + $0x78] sm:$0xff]
    %v116 = vld [vmem:[#allocation7 + $0x80] sm:$0xff]
    %v117 = vld [vmem:[#allocation7 + $0x88] sm:$0xff]
    %v118 = vld [vmem:[#allocation7 + $0x90] sm:$0xff]
    %v119 = vld [vmem:[#allocation7 + $0x98] sm:$0xff]
    %v120 = vld [vmem:[#allocation7 + $0xa0] sm:$0xff]
    %v121 = vld [vmem:[#allocation7 + $0xa8] sm:$0xff]
    %v122 = vld [vmem:[#allocation7 + $0xb0] sm:$0xff]
    %v123 = vld [vmem:[#allocation7 + $0xb8] sm:$0xff]
    %v124 = vld [vmem:[#allocation7 + $0xc0] sm:$0xff]
    %v125 = vld [vmem:[#allocation7 + $0xc8] sm:$0xff]
    %v126 = vld [vmem:[#allocation7 + $0xd0] sm:$0xff]
    %v127 = vld [vmem:[#allocation7 + $0xd8] sm:$0xff]
    %v128 = vld [vmem:[#allocation7 + $0xe0] sm:$0xff]
    %v129 = vld [vmem:[#allocation7 + $0xe8] sm:$0xff]
    %v130 = vld [vmem:[#allocation7 + $0xf0] sm:$0xff]
    %v131 = vld [vmem:[#allocation7 + $0xf8] sm:$0xff]
    %v132 = vld [vmem:[#allocation7 + $0x100] sm:$0xff]
    %v133 = vld [vmem:[#allocation7 + $0x108] sm:$0xff]
    %v134 = vld [vmem:[#allocation7 + $0x110] sm:$0xff]
    %v135 = vld [vmem:[#allocation7 + $0x118] sm:$0xff]
    %v136 = vld [vmem:[#allocation7 + $0x120] sm:$0xff]
    %v137 = vld [vmem:[#allocation7 + $0x128] sm:$0xff]
    %v138 = vld [vmem:[#allocation7 + $0x130] sm:$0xff]
    %v139 = vld [vmem:[#allocation7 + $0x138] sm:$0xff]
    %v140 = vld [vmem:[#allocation7 + $0x140] sm:$0xff]
    %v141 = vld [vmem:[#allocation7 + $0x148] sm:$0xff]
    %v142 = vld [vmem:[#allocation7 + $0x150] sm:$0xff]
    %v143 = vld [vmem:[#allocation7 + $0x158] sm:$0xff]
    %v144 = vld [vmem:[#allocation7 + $0x160] sm:$0xff]
    %v145 = vld [vmem:[#allocation7 + $0x168] sm:$0xff]
    %v146 = vld [vmem:[#allocation7 + $0x170] sm:$0xff]
    %v147 = vld [vmem:[#allocation7 + $0x178] sm:$0xff]
    %v148 = vld [vmem:[%s5] sm:$0x7]
    %v150 = vperm.slane %v148, 0
    %v151 = vperm.slane %v148, 1
    %v152 = vperm.slane %v148, 2
    %156 = vmatpush.msra.mxu0 %v145
    %157 = vmatpush.msra.mxu0 %v142
    %158 = vmatpush.msra.mxu0 %v139
    %159 = vmatpush.msra.mxu0 %v136
    %160 = vmatpush.msra.mxu0 %v133
    %161 = vmatpush.msra.mxu0 %v130
    %162 = vmatpush.msra.mxu0 %v127
    %163 = vmatpush.msra.mxu0 %v124
    %164 = vmatpush.msra.mxu0 %v121
    %165 = vmatpush.msra.mxu0 %v118
    %166 = vmatpush.msra.mxu0 %v115
    %167 = vmatpush.msra.mxu0 %v112
    %168 = vmatpush.msra.mxu0 %v109
    %169 = vmatpush.msra.mxu0 %v106
    %170 = vmatpush.msra.mxu0 %v103
    %171 = vmatpush.msra.mxu0 %v100
    %172 = vmatmul.f32.gmra.mxu0 %v98
    %v173 = vpop.f32.mrf.mxu0
    %v174 = vadd.f32 %v150, %v173
    %175 = vdwg.mxu0
    %176 = vmatpush.msra.mxu0 %v146
    %177 = vmatpush.msra.mxu0 %v143
    %178 = vmatpush.msra.mxu0 %v140
    %179 = vmatpush.msra.mxu0 %v137
    %180 = vmatpush.msra.mxu0 %v134
    %181 = vmatpush.msra.mxu0 %v131
    %182 = vmatpush.msra.mxu0 %v128
    %183 = vmatpush.msra.mxu0 %v125
    %184 = vmatpush.msra.mxu0 %v122
    %185 = vmatpush.msra.mxu0 %v119
    %186 = vmatpush.msra.mxu0 %v116
    %187 = vmatpush.msra.mxu0 %v113
    %188 = vmatpush.msra.mxu0 %v110
    %189 = vmatpush.msra.mxu0 %v107
    %190 = vmatpush.msra.mxu0 %v104
    %191 = vmatpush.msra.mxu0 %v101
    %192 = vmatmul.f32.gmra.mxu0 %v98
    %v193 = vpop.f32.mrf.mxu0
    %v194 = vadd.f32 %v151, %v193
    %195 = vdwg.mxu0
    %196 = vmatpush.msra.mxu0 %v147
    %197 = vmatpush.msra.mxu0 %v144
    %198 = vmatpush.msra.mxu0 %v141
    %199 = vmatpush.msra.mxu0 %v138
    %200 = vmatpush.msra.mxu0 %v135
    %201 = vmatpush.msra.mxu0 %v132
    %202 = vmatpush.msra.mxu0 %v129
    %203 = vmatpush.msra.mxu0 %v126
    %204 = vmatpush.msra.mxu0 %v123
    %205 = vmatpush.msra.mxu0 %v120
    %206 = vmatpush.msra.mxu0 %v117
    %207 = vmatpush.msra.mxu0 %v114
    %208 = vmatpush.msra.mxu0 %v111
    %209 = vmatpush.msra.mxu0 %v108
    %210 = vmatpush.msra.mxu0 %v105
    %211 = vmatpush.msra.mxu0 %v102
    %212 = vmatmul.f32.gmra.mxu0 %v98
    %v213 = vpop.f32.mrf.mxu0
    %v214 = vadd.f32 %v152, %v213
    %215 = vdwg.mxu0
    %v216 = vld [vmem:[#allocation8] sm:$0xff]
    %v217 = vld [vmem:[#allocation8 + $0x8] sm:$0xff]
    %v218 = vld [vmem:[#allocation8 + $0x10] sm:$0xff]
    %v219 = vld [vmem:[#allocation8 + $0x18] sm:$0xff]
    %v220 = vld [vmem:[#allocation8 + $0x20] sm:$0xff]
    %v221 = vld [vmem:[#allocation8 + $0x28] sm:$0xff]
    %v222 = vld [vmem:[#allocation8 + $0x30] sm:$0xff]
    %v223 = vld [vmem:[#allocation8 + $0x38] sm:$0xff]
    %v224 = vld [vmem:[#allocation8 + $0x40] sm:$0xff]
    %v225 = vld [vmem:[#allocation8 + $0x48] sm:$0xff]
    %v226 = vld [vmem:[#allocation8 + $0x50] sm:$0xff]
    %v227 = vld [vmem:[#allocation8 + $0x58] sm:$0xff]
    %v228 = vld [vmem:[#allocation8 + $0x60] sm:$0xff]
    %v229 = vld [vmem:[#allocation8 + $0x68] sm:$0xff]
    %v230 = vld [vmem:[#allocation8 + $0x70] sm:$0xff]
    %v231 = vld [vmem:[#allocation8 + $0x78] sm:$0xff]
    %v232 = vld [vmem:[#allocation8 + $0x80] sm:$0xff]
    %v233 = vld [vmem:[#allocation8 + $0x88] sm:$0xff]
    %v234 = vld [vmem:[#allocation8 + $0x90] sm:$0xff]
    %v235 = vld [vmem:[#allocation8 + $0x98] sm:$0xff]
    %v236 = vld [vmem:[#allocation8 + $0xa0] sm:$0xff]
    %v237 = vld [vmem:[#allocation8 + $0xa8] sm:$0xff]
    %v238 = vld [vmem:[#allocation8 + $0xb0] sm:$0xff]
    %v239 = vld [vmem:[#allocation8 + $0xb8] sm:$0xff]
    %v240 = vld [vmem:[#allocation8 + $0xc0] sm:$0xff]
    %v241 = vld [vmem:[#allocation8 + $0xc8] sm:$0xff]
    %v242 = vld [vmem:[#allocation8 + $0xd0] sm:$0xff]
    %v243 = vld [vmem:[#allocation8 + $0xd8] sm:$0xff]
    %v244 = vld [vmem:[#allocation8 + $0xe0] sm:$0xff]
    %v245 = vld [vmem:[#allocation8 + $0xe8] sm:$0xff]
    %v246 = vld [vmem:[#allocation8 + $0xf0] sm:$0xff]
    %v247 = vld [vmem:[#allocation8 + $0xf8] sm:$0xff]
    %248 = vmatpush.msra.mxu0 %v246
    %249 = vmatpush.msra.mxu0 %v244
    %250 = vmatpush.msra.mxu0 %v242
    %251 = vmatpush.msra.mxu0 %v240
    %252 = vmatpush.msra.mxu0 %v238
    %253 = vmatpush.msra.mxu0 %v236
    %254 = vmatpush.msra.mxu0 %v234
    %255 = vmatpush.msra.mxu0 %v232
    %256 = vmatpush.msra.mxu0 %v230
    %257 = vmatpush.msra.mxu0 %v228
    %258 = vmatpush.msra.mxu0 %v226
    %259 = vmatpush.msra.mxu0 %v224
    %260 = vmatpush.msra.mxu0 %v222
    %261 = vmatpush.msra.mxu0 %v220
    %262 = vmatpush.msra.mxu0 %v218
    %263 = vmatpush.msra.mxu0 %v216
    %264 = vmatmul.f32.gmra.mxu0 %v99
    %v265 = vpop.f32.mrf.mxu0
    %v266 = vadd.f32 0.0, %v265
    %267 = vdwg.mxu0
    %268 = vmatpush.msra.mxu0 %v247
    %269 = vmatpush.msra.mxu0 %v245
    %270 = vmatpush.msra.mxu0 %v243
    %271 = vmatpush.msra.mxu0 %v241
    %272 = vmatpush.msra.mxu0 %v239
    %273 = vmatpush.msra.mxu0 %v237
    %274 = vmatpush.msra.mxu0 %v235
    %275 = vmatpush.msra.mxu0 %v233
    %276 = vmatpush.msra.mxu0 %v231
    %277 = vmatpush.msra.mxu0 %v229
    %278 = vmatpush.msra.mxu0 %v227
    %279 = vmatpush.msra.mxu0 %v225
    %280 = vmatpush.msra.mxu0 %v223
    %281 = vmatpush.msra.mxu0 %v221
    %282 = vmatpush.msra.mxu0 %v219
    %283 = vmatpush.msra.mxu0 %v217
    %284 = vmatmul.f32.gmra.mxu0 %v99
    %v285 = vpop.f32.mrf.mxu0
    %v286 = vadd.f32 0.0, %v285
    %287 = vdwg.mxu0
    %v288 = vadd.f32 %v174, %v266
    %v289 = vadd.f32 %v194, %v286
    %v290 = vxor.u32 %v288, 2147483648
    %v291 = vxor.u32 %v289, 2147483648
    %v292 = vmul.f32 %v290, 1.442695
    %v293 = vpow.pop %v292
    %v294 = vmul.f32 %v291, 1.442695
    %v295 = vpow.pop %v294
    %v296 = vadd.f32 %v293, 1.0
    %v297 = vadd.f32 %v295, 1.0
    %v298 = vrcp.pop %v296
    %v299 = vmul.f32 %v296, %v298
    %v300 = vsub.f32 1.0, %v299
    %v301 = vmul.f32 %v298, %v300
    %v302 = vadd.f32 %v298, %v301
    %vm303 = vweird.f32 %v296
    %vm304 = vweird.f32 %v298
    %vm305 = vmor %vm303, %vm304
    %v306 = vsel %vm305, %v298, %v302
    %v307 = vand.u32 2147483647, %v296
    %vm308 = vcmp.eq.f32.partialorder %v307, 8.507059e+37
    %v309 = vand.u32 %v296, 2147483648
    %v310 = vor.u32 1.1754944e-38, %v309
    %v311 = vsel %vm308, %v310, %v306
    %v312 = vmul.f32 1.0, %v311
    %v313 = vrcp.pop %v297
    %v314 = vmul.f32 %v297, %v313
    %v315 = vsub.f32 1.0, %v314
    %v316 = vmul.f32 %v313, %v315
    %v317 = vadd.f32 %v313, %v316
    %vm318 = vweird.f32 %v297
    %vm319 = vweird.f32 %v313
    %vm320 = vmor %vm318, %vm319
    %v321 = vsel %vm320, %v313, %v317
    %v322 = vand.u32 2147483647, %v297
    %vm323 = vcmp.eq.f32.partialorder %v322, 8.507059e+37
    %v324 = vand.u32 %v297, 2147483648
    %v325 = vor.u32 1.1754944e-38, %v324
    %v326 = vsel %vm323, %v325, %v321
    %v327 = vmul.f32 1.0, %v326
    %v328 = vmul.f32 %v327, %v99
    %v329 = vld [vmem:[#allocation10] sm:$0xff]
    %v330 = vld [vmem:[#allocation10 + $0x8] sm:$0xff]
    %v331 = vld [vmem:[#allocation10 + $0x10] sm:$0xff]
    %v332 = vld [vmem:[#allocation10 + $0x18] sm:$0xff]
    %v333 = vld [vmem:[#allocation10 + $0x20] sm:$0xff]
    %v334 = vld [vmem:[#allocation10 + $0x28] sm:$0xff]
    %v335 = vld [vmem:[#allocation10 + $0x30] sm:$0xff]
    %v336 = vld [vmem:[#allocation10 + $0x38] sm:$0xff]
    %v337 = vld [vmem:[#allocation10 + $0x40] sm:$0xff]
    %v338 = vld [vmem:[#allocation10 + $0x48] sm:$0xff]
    %v339 = vld [vmem:[#allocation10 + $0x50] sm:$0xff]
    %v340 = vld [vmem:[#allocation10 + $0x58] sm:$0xff]
    %v341 = vld [vmem:[#allocation10 + $0x60] sm:$0xff]
    %v342 = vld [vmem:[#allocation10 + $0x68] sm:$0xff]
    %v343 = vld [vmem:[#allocation10 + $0x70] sm:$0xff]
    %v344 = vld [vmem:[#allocation10 + $0x78] sm:$0xff]
    %345 = vmatpush.msra.mxu0 %v344
    %346 = vmatpush.msra.mxu0 %v343
    %347 = vmatpush.msra.mxu0 %v342
    %348 = vmatpush.msra.mxu0 %v341
    %349 = vmatpush.msra.mxu0 %v340
    %350 = vmatpush.msra.mxu0 %v339
    %351 = vmatpush.msra.mxu0 %v338
    %352 = vmatpush.msra.mxu0 %v337
    %353 = vmatpush.msra.mxu0 %v336
    %354 = vmatpush.msra.mxu0 %v335
    %355 = vmatpush.msra.mxu0 %v334
    %356 = vmatpush.msra.mxu0 %v333
    %357 = vmatpush.msra.mxu0 %v332
    %358 = vmatpush.msra.mxu0 %v331
    %359 = vmatpush.msra.mxu0 %v330
    %360 = vmatpush.msra.mxu0 %v329
    %361 = vmatmul.f32.gmra.mxu0 %v328
    %v362 = vpop.f32.mrf.mxu0
    %v363 = vadd.f32 0.0, %v362
    %364 = vdwg.mxu0
    %v365 = vadd.f32 %v214, %v363
    %v366 = vtanh.pop %v365
    %v367 = vsub.f32 %v366, %v99
    %v368 = vmul.f32 %v312, %v367
    %v369 = vadd.f32 %v99, %v368
    %370 = vst [vmem:[#allocation11] sm:$0xff] %v369
    // Predicated region
    $region46: #{tpu_custom_call.1} parent=1 // pred_check
      _
    $region47: #{tpu_custom_call.1} parent=1 // pred_check_branch
      %372 = sbr.rel (0) target = $region49
    $region48: #{tpu_custom_call.1} parent=1 // pred_region
      %374 = vsyncadd [#allocation4], 0
      %s376 = sshll.u32 [#allocation11], 4
      %s377 = int_to_ptr.vmem [resolvable:$true] %s376
      %s378 = sshll.u32 %s6, 4
      %s379 = int_to_ptr.hbm [resolvable:$true] %s378
      %381 = dma.vmem_to_hbm [thread:$0]  %s377, 128, %s379, [#allocation4]
    $region49: #{tpu_custom_call.1} parent=1 // pred_fallthru
      _
    // Predicated region
    $region50: #{tpu_custom_call.1} parent=1 // pred_check
      _
    $region51: #{tpu_custom_call.1} parent=1 // pred_check_branch
      %383 = sbr.rel (0) target = $region53
    $region52: #{tpu_custom_call.1} parent=1 // pred_region
      %385 = dma.done [#allocation4], 128
    $region53: #{tpu_custom_call.1} parent=1 // pred_fallthru
      _
    %386 = vsyncpa [#allocation3], 1
    %387 = vsyncpa [#allocation6], 1
    %388 = vsyncpa [#allocation9], 1
    %389 = vsyncpa [#allocation4], 1

</llo_original>
